<compile_context>
chip_gen: v7x
topology: tpu7x:2x2x1
jax: 0.10.0
libtpu: 0.0.40
codegen_flags: <defaults>
</compile_context>

<pallas_src>
import functools

import jax
import jax.numpy as jnp
from jax import lax
from jax.experimental import pallas as pl
from jax.experimental.pallas import tpu as pltpu


_VMEM = pl.BlockSpec(memory_space=pltpu.MemorySpace.VMEM)


# -----------------------------------------------------------------------------
# Kernel A: per-node CNN stand-in (conv3x3 as matmul + ReLU -> GAP -> dense)
# -----------------------------------------------------------------------------
def _cnn_node_kernel(patches_ref, wc_ref, bc_ref, wl_ref, bl_ref, seg_ref):
    # patches_ref: (HW, 9C) bf16 block for one node (grid axis = node index).
    feat = jnp.dot(patches_ref[...], wc_ref[...],
                   preferred_element_type=jnp.float32)            # (HW, 128) f32
    feat = jnp.maximum(feat + bc_ref[...], 0.0)                   # ReLU, lane-dense
    hw = feat.shape[0]
    pooled = jnp.sum(feat, axis=0, keepdims=True) * (1.0 / hw)    # (1, 128) GAP
    seg_row = jnp.dot(pooled.astype(jnp.bfloat16), wl_ref[...],
                      preferred_element_type=jnp.float32) + bl_ref[...]
    seg_ref[0] = seg_row                                          # (1, 512)


# -----------------------------------------------------------------------------
# Kernel B: GAT layer 1 -> GAT layer 2 -> single Euler step, heads fused
# -----------------------------------------------------------------------------
def _gat_ode_kernel(seg_ref, w1_ref, a1_ref, w2_ref, a2_ref, mask_ref, o_ref,
                    *, nheads, neg_slope):
    f32, bf16 = jnp.float32, jnp.bfloat16
    seg = seg_ref[...]                        # (N, 512) f32
    mask2d = mask_ref[...]                    # (H*N, N) f32: 0 / -9e15 per head block
    n = seg.shape[0]
    hn = mask2d.shape[0]                      # H * N

    # Constant head-block selection masks (built once from iota, exact 0/1).
    row_head = lax.broadcasted_iota(jnp.int32, (hn, nheads), 0) // n
    col_head = lax.broadcasted_iota(jnp.int32, (hn, nheads), 1)
    r_sel = (row_head == col_head).astype(f32)            # (HN, H): head-of-row selector
    row_node = lax.broadcasted_iota(jnp.int32, (hn, n), 0) % n
    col_node = lax.broadcasted_iota(jnp.int32, (hn, n), 1)
    a_sel = (row_node == col_node).astype(f32)            # (HN, N): H-tiled identity
    rows_t = lax.broadcasted_iota(jnp.int32, (n, hn), 0)
    cols_t = lax.broadcasted_iota(jnp.int32, (n, hn), 1) % n
    a_sel_t = (rows_t == cols_t).astype(f32)               # (N, HN): sums head blocks

    def gat_layer(x, w_ref, a_ref):
        w_all = w_ref[...]                                  # bf16 (F_in, H*F)
        hf = w_all.shape[1]
        f_out = hf // nheads
        # all heads' projections in one lane-dense MXU matmul
        h_all = jnp.dot(x.astype(bf16), w_all,
                        preferred_element_type=f32)         # (N, H*F) f32
        # all heads' src/dst attention scores in one matmul (f32, tiny)
        scores = jnp.dot(h_all, a_ref[...],
                         preferred_element_type=f32)        # (N, 2H)
        s_t = jnp.transpose(scores)                         # (2H, N), one tiny vxpose
        # heads-stacked logits: e[h*N+i, j] = src[i, h] + dst[j, h]
        src_sel = jnp.dot(a_sel, scores[:, :nheads],
                          preferred_element_type=f32) * r_sel          # (HN, H)
        src_col = jnp.sum(src_sel, axis=1, keepdims=True)              # (HN, 1)
        dst_rows = jnp.dot(r_sel, s_t[nheads:, :],
                           preferred_element_type=f32)                 # (HN, N)
        e = src_col + dst_rows
        e = jnp.where(e > 0.0, e, neg_slope * e)            # LeakyReLU, all heads at once
        e = e + mask2d                                      # additive adjacency mask
        e = e - jnp.max(e, axis=1, keepdims=True)           # ONE fused row softmax
        p = jnp.exp(e)
        attn = p / jnp.sum(p, axis=1, keepdims=True)        # (HN, N)
        # all heads' weighted sums in a single MXU matmul; keep diagonal
        # (head-h attention x head-h features) blocks only.
        outs = jnp.dot(attn.astype(bf16), h_all.astype(bf16),
                       preferred_element_type=f32)          # (HN, H*F)
        blk = (lax.broadcasted_iota(jnp.int32, (hn, hf), 0) // n ==
               lax.broadcasted_iota(jnp.int32, (hn, hf), 1) // f_out)
        outs = outs * blk.astype(f32)
        y = jnp.dot(a_sel_t, outs, preferred_element_type=f32)   # (N, H*F) concat order
        # ELU (alpha=1); inference mode => dropout is identity
        return jnp.where(y > 0.0, y, jnp.exp(jnp.minimum(y, 0.0)) - 1.0)

    y = gat_layer(seg, w1_ref, a1_ref)
    y = gat_layer(y, w2_ref, a2_ref)
    # TODO(synk): module calls odeint without method= (adaptive default); we
    # implement the solver configured in __init__ (euler, step_size=1.0,
    # t=[0,1]):  z = y0 + 1.0 * f(t0, y0)
    o_ref[...] = seg + y


# -----------------------------------------------------------------------------
# Glue: im2col, head-fused parameter packing, pallas_call wrappers
# -----------------------------------------------------------------------------
def im2col_3x3_same(x_nhwc):
    B, H, W, C = x_nhwc.shape
    xp = jnp.pad(x_nhwc, ((0, 0), (1, 1), (1, 1), (0, 0)))
    cols = [xp[:, di:di + H, dj:dj + W, :] for di in range(3) for dj in range(3)]
    return jnp.concatenate(cols, axis=-1).reshape(B * H * W, 9 * C)


def _heads_concat(W):
    # (H, F_in, F_out) -> (F_in, H*F_out): column block h == W[h]
    H, F_in, F_out = W.shape
    return jnp.transpose(W, (1, 0, 2)).reshape(F_in, H * F_out)


def _attn_score_mat(a_src, a_dst):
    # a_src: (H, F, 1), a_dst: (H, 1, F)  ->  (H*F, 2H) block matrix so that
    # (h_all @ A)[:, h] = per-head src score, (h_all @ A)[:, H+h] = dst score.
    H, F, _ = a_src.shape
    eye = jnp.eye(H, dtype=jnp.float32)
    A_src = (a_src[:, :, 0][:, :, None] * eye[:, None, :]).reshape(H * F, H)
    A_dst = (a_dst[:, 0, :][:, :, None] * eye[:, None, :]).reshape(H * F, H)
    return jnp.concatenate([A_src, A_dst], axis=1)


def subg_gat_net_ode_forward(x_img, p, adj, neg_slope):
    n_nodes = x_img.shape[0]  # number of graph nodes == batch of x_meas_src
    # TODO(synk): CNN_ode definition is not provided in the reference; using a
    # minimal stand-in (conv3x3 + ReLU -> global avg pool -> dense to 512).
    x_nhwc = jnp.transpose(x_img, (0, 2, 3, 1))                  # NCHW -> NHWC
    patches = im2col_3x3_same(x_nhwc)                            # (N*HW, 9C) f32
    hw = patches.shape[0] // n_nodes
    k9 = patches.shape[1]

    cmid = p["Wc"].shape[1]
    dim_out = p["Wl"].shape[1]
    cpad = max(128, ((cmid + 127) // 128) * 128)                 # lane-dense conv width
    wc = jnp.zeros((k9, cpad), jnp.float32).at[:, :cmid].set(p["Wc"]).astype(jnp.bfloat16)
    bc = jnp.zeros((1, cpad), jnp.float32).at[:, :cmid].set(p["bc"])
    wl = jnp.zeros((cpad, dim_out), jnp.float32).at[:cmid, :].set(p["Wl"]).astype(jnp.bfloat16)
    bl = p["bl"].astype(jnp.float32)

    # ---- Kernel A: CNN stage, gridded over nodes, parallel for megacore ----
    seg = pl.pallas_call(
        _cnn_node_kernel,
        out_shape=jax.ShapeDtypeStruct((n_nodes, 1, dim_out), jnp.float32),
        grid=(n_nodes,),
        in_specs=[
            pl.BlockSpec((hw, k9), lambda i: (i, 0)),
            pl.BlockSpec((k9, cpad), lambda i: (0, 0)),
            pl.BlockSpec((1, cpad), lambda i: (0, 0)),
            pl.BlockSpec((cpad, dim_out), lambda i: (0, 0)),
            pl.BlockSpec((1, dim_out), lambda i: (0, 0)),
        ],
        out_specs=pl.BlockSpec((1, 1, dim_out), lambda i: (i, 0, 0)),
        compiler_params=pltpu.CompilerParams(
            dimension_semantics=("parallel",),
            vmem_limit_bytes=32 * 1024 * 1024),
    )(patches.astype(jnp.bfloat16), wc, bc, wl, bl).reshape(n_nodes, dim_out)

    # ---- Kernel B: fused GAT layers + Euler step ----
    nheads = p["W1"].shape[0]
    w1_all = _heads_concat(p["W1"]).astype(jnp.bfloat16)         # (512, H*dim_hid)
    w2_all = _heads_concat(p["W2"]).astype(jnp.bfloat16)         # (H*dim_hid, 512)
    a1 = _attn_score_mat(p["a1_src"], p["a1_dst"])               # f32
    a2 = _attn_score_mat(p["a2_src"], p["a2_dst"])               # f32
    mask2d = jnp.tile(jnp.where(adj > 0, 0.0, -9.0e15).astype(jnp.float32),
                      (nheads, 1))                               # (H*N, N)

    kernel = functools.partial(_gat_ode_kernel, nheads=nheads, neg_slope=neg_slope)
    dim_final = w2_all.shape[1]
    out = pl.pallas_call(
        kernel,
        out_shape=jax.ShapeDtypeStruct((n_nodes, dim_final), jnp.float32),
        in_specs=[_VMEM] * 6,
        out_specs=_VMEM,
        compiler_params=pltpu.CompilerParams(vmem_limit_bytes=32 * 1024 * 1024),
    )(seg, w1_all, a1, w2_all, a2, mask2d)
    return out


# -----------------------------------------------------------------------------
# Pure-JAX reference (for validation)
# -----------------------------------------------------------------------------
def _ref_gat_head(x, W, a_src, a_dst, adj, neg_slope):
    h = x @ W
    e = h @ a_src + a_dst @ h.T
    e = jnp.where(e > 0, e, neg_slope * e)
    e = jnp.where(adj > 0, e, -9.0e15)
    attn = jax.nn.softmax(e, axis=1)
    hp = attn @ h
    return jnp.where(hp > 0, hp, jnp.exp(jnp.minimum(hp, 0.0)) - 1.0)


def reference_forward(x_img, p, adj, neg_slope):
    B = x_img.shape[0]
    x_nhwc = jnp.transpose(x_img, (0, 2, 3, 1))
    patches = im2col_3x3_same(x_nhwc)
    feat = jnp.maximum(patches @ p["Wc"] + p["bc"], 0.0)
    pooled = feat.reshape(B, -1, p["Wc"].shape[1]).mean(axis=1)
    seg = pooled @ p["Wl"] + p["bl"]

    def layer(x, W, a_s, a_d):
        return jnp.concatenate(
            [_ref_gat_head(x, W[h], a_s[h], a_d[h], adj, neg_slope)
             for h in range(W.shape[0])], axis=1)

    y = layer(seg, p["W1"], p["a1_src"], p["a1_dst"])
    y = layer(y, p["W2"], p["a2_src"], p["a2_dst"])
    return seg + y


# -----------------------------------------------------------------------------
# Deterministic parameter init (xavier-uniform, gain ~ 1.414 as in the module)
# -----------------------------------------------------------------------------
def xavier_uniform(key, shape, gain=1.414):
    fan_in, fan_out = shape[-2], shape[-1]
    bound = gain * (6.0 / (fan_in + fan_out)) ** 0.5
    return jax.random.uniform(key, shape, jnp.float32, -bound, bound)


if __name__ == "__main__":
    key = jax.random.PRNGKey(0)
    keys = jax.random.split(key, 10)

    # Small shapes consistent with the module:
    #   odefunc dim_feat is hard-coded to 512 => flattened image feature = 512,
    #   and dimreadout_meas must equal 512 so the ODE state shape is preserved.
    N_nodes, C_in, H_img, W_img = 8, 4, 16, 16
    nheads, dim_hid, dim_readout = 4, 32, 512       # per-head readout = 128
    Cmid = 16
    neg_slope = 0.2                                  # alpha (LeakyReLU slope)

    params = {
        # ImageFeature stand-in
        "Wc": xavier_uniform(keys[0], (9 * C_in, Cmid), gain=1.0),
        "bc": jnp.zeros((1, Cmid), jnp.float32),
        "Wl": xavier_uniform(keys[1], (Cmid, 512), gain=1.0),
        "bl": jnp.zeros((1, 512), jnp.float32),
        # GAT layer 1: heads x (512 -> dim_hid)
        "W1": xavier_uniform(keys[2], (nheads, 512, dim_hid)),
        "a1_src": xavier_uniform(keys[3], (nheads, dim_hid, 1)),
        "a1_dst": xavier_uniform(keys[4], (nheads, 1, dim_hid)),
        # GAT layer 2: heads x (dim_hid*nheads -> dim_readout // nheads)
        "W2": xavier_uniform(keys[5], (nheads, dim_hid * nheads, dim_readout // nheads)),
        "a2_src": xavier_uniform(keys[6], (nheads, dim_readout // nheads, 1)),
        "a2_dst": xavier_uniform(keys[7], (nheads, 1, dim_readout // nheads)),
    }

    # full_seg_adj: deterministic ring adjacency with self-loops
    idx = jnp.arange(N_nodes)
    diff = jnp.abs(idx[:, None] - idx[None, :])
    adj = ((diff <= 1) | (diff == N_nodes - 1)).astype(jnp.float32)

    x_meas_src = jax.random.normal(keys[8], (N_nodes, C_in, H_img, W_img), jnp.float32)

    out = subg_gat_net_ode_forward(x_meas_src, params, adj, neg_slope)
    out = jax.block_until_ready(out)

    ref = reference_forward(x_meas_src, params, adj, neg_slope)
    assert out.shape == (N_nodes, 512), out.shape
    assert bool(jnp.all(jnp.isfinite(out)))
    max_err = float(jnp.max(jnp.abs(out - ref)))
    assert bool(jnp.allclose(out, ref, rtol=3e-2, atol=3e-2)), max_err

    print("KERNEL_OK")
</pallas_src>

<mosaic_0001>
module attributes {stable_mosaic.version = 11 : i64} {
  func.func @_cnn_node_kernel(%arg0: i32, %arg1: memref<256x36xbf16, #tpu.memory_space<vmem>>, %arg2: memref<36x128xbf16, #tpu.memory_space<vmem>>, %arg3: memref<1x128xf32, #tpu.memory_space<vmem>>, %arg4: memref<128x512xbf16, #tpu.memory_space<vmem>>, %arg5: memref<1x512xf32, #tpu.memory_space<vmem>>, %arg6: memref<1x1x512xf32, #tpu.memory_space<vmem>>) attributes {dimension_semantics = [#tpu.dimension_semantics<parallel>], iteration_bounds = array<i64: 8>, scalar_prefetch = 0 : i64, scratch_operands = 0 : i64, tpu.core_type = #tpu.core_type<tc>, window_params = [{transform_indices = @transform_0, window_bounds = array<i64: 256, 36>}, {pipeline_mode = #tpu.pipeline_mode<synchronous>, transform_indices = @transform_1, window_bounds = array<i64: 36, 128>}, {pipeline_mode = #tpu.pipeline_mode<synchronous>, transform_indices = @transform_2, window_bounds = array<i64: 1, 128>}, {pipeline_mode = #tpu.pipeline_mode<synchronous>, transform_indices = @transform_3, window_bounds = array<i64: 128, 512>}, {pipeline_mode = #tpu.pipeline_mode<synchronous>, transform_indices = @transform_4, window_bounds = array<i64: 1, 512>}, {transform_indices = @transform_5, window_bounds = array<i64: 1, 1, 512>}]} {
    %c0 = arith.constant 0 : index
    %c0_0 = arith.constant 0 : index
    %0 = vector.load %arg1[%c0, %c0_0] : memref<256x36xbf16, #tpu.memory_space<vmem>>, vector<256x36xbf16>
    %c0_1 = arith.constant 0 : index
    %c0_2 = arith.constant 0 : index
    %1 = vector.load %arg2[%c0_1, %c0_2] : memref<36x128xbf16, #tpu.memory_space<vmem>>, vector<36x128xbf16>
    %cst = arith.constant dense<0.000000e+00> : vector<256x128xf32>
    %2 = tpu.matmul %0, %1, %cst {dimension_numbers = #tpu.dot_dimension_numbers<[1], [0], [0], [1], [0, 0, 1, 1], [], []>} : vector<256x36xbf16>, vector<36x128xbf16>, vector<256x128xf32> -> vector<256x128xf32>
    %c0_3 = arith.constant 0 : index
    %c0_4 = arith.constant 0 : index
    %3 = vector.load %arg3[%c0_3, %c0_4] : memref<1x128xf32, #tpu.memory_space<vmem>>, vector<1x128xf32>
    %4 = vector.broadcast %3 : vector<1x128xf32> to vector<256x128xf32>
    %5 = arith.addf %2, %4 : vector<256x128xf32>
    %cst_5 = arith.constant 0.000000e+00 : f32
    %6 = vector.broadcast %cst_5 : f32 to vector<256x128xf32>
    %7 = arith.maximumf %5, %6 : vector<256x128xf32>
    %cst_6 = arith.constant dense<0.000000e+00> : vector<128xf32>
    %8 = vector.multi_reduction <add>, %7, %cst_6 [0] : vector<256x128xf32> to vector<128xf32>
    %9 = vector.shape_cast %8 : vector<128xf32> to vector<1x128xf32>
    %cst_7 = arith.constant 3.906250e-03 : f32
    %10 = vector.broadcast %cst_7 : f32 to vector<1x128xf32>
    %11 = arith.mulf %9, %10 : vector<1x128xf32>
    %12 = arith.truncf %11 : vector<1x128xf32> to vector<1x128xbf16>
    %c0_8 = arith.constant 0 : index
    %c0_9 = arith.constant 0 : index
    %13 = vector.load %arg4[%c0_8, %c0_9] : memref<128x512xbf16, #tpu.memory_space<vmem>>, vector<128x512xbf16>
    %cst_10 = arith.constant dense<0.000000e+00> : vector<1x512xf32>
    %14 = tpu.matmul %12, %13, %cst_10 {dimension_numbers = #tpu.dot_dimension_numbers<[1], [0], [0], [1], [0, 0, 1, 1], [], []>} : vector<1x128xbf16>, vector<128x512xbf16>, vector<1x512xf32> -> vector<1x512xf32>
    %c0_11 = arith.constant 0 : index
    %c0_12 = arith.constant 0 : index
    %15 = vector.load %arg5[%c0_11, %c0_12] : memref<1x512xf32, #tpu.memory_space<vmem>>, vector<1x512xf32>
    %16 = arith.addf %14, %15 : vector<1x512xf32>
    %c0_13 = arith.constant 0 : index
    %c0_14 = arith.constant 0 : index
    %c0_15 = arith.constant 0 : index
    %17 = vector.load %arg6[%c0_13, %c0_14, %c0_15] : memref<1x1x512xf32, #tpu.memory_space<vmem>>, vector<1x1x512xf32>
    %18 = vector.shape_cast %17 : vector<1x1x512xf32> to vector<1x512xf32>
    %19 = vector.shape_cast %16 : vector<1x512xf32> to vector<1x1x512xf32>
    tpu.vector_store %arg6[%c0_13, %c0_14, %c0_15], %19 {strides = array<i32>} : memref<1x1x512xf32, #tpu.memory_space<vmem>>, vector<1x1x512xf32>,
    return
  }
  func.func @transform_0(%arg0: i32) -> (i32, i32) {
    %c0_i32 = arith.constant 0 : i32
    %c0_i32_0 = arith.constant 0 : i32
    return %arg0, %c0_i32 : i32, i32
  }
  func.func @transform_1(%arg0: i32) -> (i32, i32) {
    %c0_i32 = arith.constant 0 : i32
    %c0_i32_0 = arith.constant 0 : i32
    %c0_i32_1 = arith.constant 0 : i32
    return %c0_i32, %c0_i32_0 : i32, i32
  }
  func.func @transform_2(%arg0: i32) -> (i32, i32) {
    %c0_i32 = arith.constant 0 : i32
    %c0_i32_0 = arith.constant 0 : i32
    %c0_i32_1 = arith.constant 0 : i32
    return %c0_i32, %c0_i32_0 : i32, i32
  }
  func.func @transform_3(%arg0: i32) -> (i32, i32) {
    %c0_i32 = arith.constant 0 : i32
    %c0_i32_0 = arith.constant 0 : i32
    %c0_i32_1 = arith.constant 0 : i32
    return %c0_i32, %c0_i32_0 : i32, i32
  }
  func.func @transform_4(%arg0: i32) -> (i32, i32) {
    %c0_i32 = arith.constant 0 : i32
    %c0_i32_0 = arith.constant 0 : i32
    %c0_i32_1 = arith.constant 0 : i32
    return %c0_i32, %c0_i32_0 : i32, i32
  }
  func.func @transform_5(%arg0: i32) -> (i32, i32, i32) {
    %c0_i32 = arith.constant 0 : i32
    %c0_i32_0 = arith.constant 0 : i32
    %c0_i32_1 = arith.constant 0 : i32
    return %arg0, %c0_i32, %c0_i32_0 : i32, i32, i32
  }
}

</mosaic_0001>

<llo_original>
// kernel: tpu_custom_call.1
$region0: #{tpu_custom_call.1}
  #allocation0 [shape = 'u32[]', space=smem, size = 0x4, offset = 0x4, fixed_abs, tag = 'smem constant byte address 0x4 - core index']
  #allocation1 [shape = 'u32[144,128]{1,0:T(1,128)}', space=vmem, size = 0x12000, scoped, tag = 'internal scratch']
  %s0 = inlined_call_operand.vmem [shape: bf16[2048,36], index: 0, kind: input, shape index: {}]
  %s1 = inlined_call_operand.vmem [shape: bf16[36,128], index: 1, kind: input, shape index: {}]
  %s2 = inlined_call_operand.vmem [shape: f32[1,128], index: 2, kind: input, shape index: {}]
  %s3 = inlined_call_operand.vmem [shape: bf16[128,512], index: 3, kind: input, shape index: {}]
  %s4 = inlined_call_operand.vmem [shape: f32[1,512], index: 4, kind: input, shape index: {}]
  %s5 = inlined_call_operand.hbm [shape: f32[8,1,512], index: 5, kind: output, shape index: {}]
  %s6 = sld [smem:[#allocation0]]
  $region53: #{tpu_custom_call.1} parent=0
    _
  %s8 = ssub.s32 1, %s6
  %s9 = scalar_select 0, %s8, %s6
  $region1: #{tpu_custom_call.1} parent=0
    #allocation2 [shape = 'u8[4096]{0}', space=vmem, size = 0x1000, scoped, tag = 'output window, operand 0']
    #allocation3 [shape = 's32[2]{0}', space=sflag, size = 0x8, scoped, tag = 'scoped memory for tpu_custom_call.1']
    %10 = vsyncpa [#allocation3], 0
    %s11 = scalar_lea.sflag [#allocation3], 1
    %12 = vsyncpa %s11, 0
    loop: start=0, step=1, limit=10
    $region2: #{tpu_custom_call.1} parent=1 // loop_pre_header
      _
    $region3: #{tpu_custom_call.1} parent=1 // loop_header
      %s14 = sphi 0, %s18
      %p15 = scmp.ge.s32.totalorder %s14, 10
      %s24 = sphi 0, %s26
      %s27 = sphi 0, %s24
      %s28 = sphi 0, %s27
      %s44 = sphi 0, %s28
      %s48 = sphi 0, %s48
      %s50 = sphi 0, %s48
      %s51 = sphi 0, %s50
      %s65 = sphi 0, %s51
      %s69 = sphi 0, %s69
      %s71 = sphi 0, %s69
      %s72 = sphi 0, %s71
      %s86 = sphi 0, %s72
      %s90 = sphi 0, %s90
      %s92 = sphi 0, %s90
      %s93 = sphi 0, %s92
      %s107 = sphi 0, %s93
      %s111 = sphi 0, %s111
      %s113 = sphi 0, %s111
      %s114 = sphi 0, %s113
      %s128 = sphi 0, %s114
      %s134 = sphi 0, %s136
      %s137 = sphi 0, %s134
      %s138 = sphi 0, %s137
      %s154 = sphi 0, %s138
    $region4: #{tpu_custom_call.1} parent=1 // loop_header_branch
      %17 = sbr.rel (%p15) target = $region8
    $region5: #{tpu_custom_call.1} parent=1 // loop_body
      %s19 = ssub.s32 %s14, 1
      %s20 = ssub.s32 %s14, 2
      %s21 = sadd.s32 %s14, 1
      %s22 = ssub.s32 %s14, %s21
      %p23 = scmp.eq.s32.totalorder %s22, 0
      %s25 = sadd.s32 %s24, 1
      %s26 = scalar_select %p23, %s24, %s25
      %p29 = pneg %p23
      %p30 = scmp.eq.s32.totalorder %s14, 7
      %p31 = por %p29, %p30
      %p32 = scmp.ne.s32.totalorder %s24, %s27
      %p33 = scmp.eq.s32.totalorder %s14, 0
      %p34 = por %p32, %p33
      %p35 = scmp.ne.s32.totalorder %s24, %s27
      %p36 = scmp.eq.s32.totalorder %s19, 7
      %p37 = por %p35, %p36
      %p38 = scmp.ne.s32.totalorder %s27, %s28
      %p39 = scmp.eq.s32.totalorder %s19, 0
      %p40 = por %p38, %p39
      %p41 = scmp.ne.s32.totalorder %s27, %s28
      %p42 = scmp.eq.s32.totalorder %s20, 7
      %p43 = por %p41, %p42
      %p45 = scmp.ne.s32.totalorder %s28, %s44
      %p46 = scmp.eq.s32.totalorder %s20, 0
      %p47 = por %p45, %p46
      %s49 = sadd.s32 %s48, 1
      %p52 = scmp.eq.s32.totalorder %s14, 7
      %p53 = scmp.ne.s32.totalorder %s48, %s50
      %p54 = scmp.eq.s32.totalorder %s14, 0
      %p55 = por %p53, %p54
      %p56 = scmp.ne.s32.totalorder %s48, %s50
      %p57 = scmp.eq.s32.totalorder %s19, 7
      %p58 = por %p56, %p57
      %p59 = scmp.ne.s32.totalorder %s50, %s51
      %p60 = scmp.eq.s32.totalorder %s19, 0
      %p61 = por %p59, %p60
      %p62 = scmp.ne.s32.totalorder %s50, %s51
      %p63 = scmp.eq.s32.totalorder %s20, 7
      %p64 = por %p62, %p63
      %p66 = scmp.ne.s32.totalorder %s51, %s65
      %p67 = scmp.eq.s32.totalorder %s20, 0
      %p68 = por %p66, %p67
      %s70 = sadd.s32 %s69, 1
      %p73 = scmp.eq.s32.totalorder %s14, 7
      %p74 = scmp.ne.s32.totalorder %s69, %s71
      %p75 = scmp.eq.s32.totalorder %s14, 0
      %p76 = por %p74, %p75
      %p77 = scmp.ne.s32.totalorder %s69, %s71
      %p78 = scmp.eq.s32.totalorder %s19, 7
      %p79 = por %p77, %p78
      %p80 = scmp.ne.s32.totalorder %s71, %s72
      %p81 = scmp.eq.s32.totalorder %s19, 0
      %p82 = por %p80, %p81
      %p83 = scmp.ne.s32.totalorder %s71, %s72
      %p84 = scmp.eq.s32.totalorder %s20, 7
      %p85 = por %p83, %p84
      %p87 = scmp.ne.s32.totalorder %s72, %s86
      %p88 = scmp.eq.s32.totalorder %s20, 0
      %p89 = por %p87, %p88
      %s91 = sadd.s32 %s90, 1
      %p94 = scmp.eq.s32.totalorder %s14, 7
      %p95 = scmp.ne.s32.totalorder %s90, %s92
      %p96 = scmp.eq.s32.totalorder %s14, 0
      %p97 = por %p95, %p96
      %p98 = scmp.ne.s32.totalorder %s90, %s92
      %p99 = scmp.eq.s32.totalorder %s19, 7
      %p100 = por %p98, %p99
      %p101 = scmp.ne.s32.totalorder %s92, %s93
      %p102 = scmp.eq.s32.totalorder %s19, 0
      %p103 = por %p101, %p102
      %p104 = scmp.ne.s32.totalorder %s92, %s93
      %p105 = scmp.eq.s32.totalorder %s20, 7
      %p106 = por %p104, %p105
      %p108 = scmp.ne.s32.totalorder %s93, %s107
      %p109 = scmp.eq.s32.totalorder %s20, 0
      %p110 = por %p108, %p109
      %s112 = sadd.s32 %s111, 1
      %p115 = scmp.eq.s32.totalorder %s14, 7
      %p116 = scmp.ne.s32.totalorder %s111, %s113
      %p117 = scmp.eq.s32.totalorder %s14, 0
      %p118 = por %p116, %p117
      %p119 = scmp.ne.s32.totalorder %s111, %s113
      %p120 = scmp.eq.s32.totalorder %s19, 7
      %p121 = por %p119, %p120
      %p122 = scmp.ne.s32.totalorder %s113, %s114
      %p123 = scmp.eq.s32.totalorder %s19, 0
      %p124 = por %p122, %p123
      %p125 = scmp.ne.s32.totalorder %s113, %s114
      %p126 = scmp.eq.s32.totalorder %s20, 7
      %p127 = por %p125, %p126
      %p129 = scmp.ne.s32.totalorder %s114, %s128
      %p130 = scmp.eq.s32.totalorder %s20, 0
      %p131 = por %p129, %p130
      %s132 = ssub.s32 %s14, %s21
      %p133 = scmp.eq.s32.totalorder %s132, 0
      %s135 = sadd.s32 %s134, 1
      %s136 = scalar_select %p133, %s134, %s135
      %p139 = pneg %p133
      %p140 = scmp.eq.s32.totalorder %s14, 7
      %p141 = por %p139, %p140
      %p142 = scmp.ne.s32.totalorder %s134, %s137
      %p143 = scmp.eq.s32.totalorder %s14, 0
      %p144 = por %p142, %p143
      %p145 = scmp.ne.s32.totalorder %s134, %s137
      %p146 = scmp.eq.s32.totalorder %s19, 7
      %p147 = por %p145, %p146
      %p148 = scmp.ne.s32.totalorder %s137, %s138
      %p149 = scmp.eq.s32.totalorder %s19, 0
      %p150 = por %p148, %p149
      %p151 = scmp.ne.s32.totalorder %s137, %s138
      %p152 = scmp.eq.s32.totalorder %s20, 7
      %p153 = por %p151, %p152
      %p155 = scmp.ne.s32.totalorder %s138, %s154
      %p156 = scmp.eq.s32.totalorder %s20, 0
      %p157 = por %p155, %p156
      %p158 = scmp.le.s32.totalorder 1, %s14
      %p159 = scmp.lt.s32.totalorder %s14, 9
      %p160 = pnand %p158, %p159
      %p161 = pneg %p160
      // Predicated region
      $region9: #{tpu_custom_call.1} parent=5 // pred_check
        _
      $region10: #{tpu_custom_call.1} parent=5 // pred_check_branch
        %163 = sbr.rel (%p160) target = $region12
      $region11: #{tpu_custom_call.1} parent=5 // pred_region
        %s164 = ssub.s32 %s14, 1
        // Predicated region
        $region13: #{tpu_custom_call.1} parent=11 // pred_check
          %p165 = pneg %p61
        $region14: #{tpu_custom_call.1} parent=11 // pred_check_branch
          %167 = sbr.rel (%p165) target = $region16
        $region15: #{tpu_custom_call.1} parent=11 // pred_region
          _
        $region16: #{tpu_custom_call.1} parent=11 // pred_fallthru
          _
        // Predicated region
        $region17: #{tpu_custom_call.1} parent=11 // pred_check
          %p168 = pneg %p82
        $region18: #{tpu_custom_call.1} parent=11 // pred_check_branch
          %170 = sbr.rel (%p168) target = $region20
        $region19: #{tpu_custom_call.1} parent=11 // pred_region
          _
        $region20: #{tpu_custom_call.1} parent=11 // pred_fallthru
          _
        // Predicated region
        $region21: #{tpu_custom_call.1} parent=11 // pred_check
          %p171 = pneg %p103
        $region22: #{tpu_custom_call.1} parent=11 // pred_check_branch
          %173 = sbr.rel (%p171) target = $region24
        $region23: #{tpu_custom_call.1} parent=11 // pred_region
          _
        $region24: #{tpu_custom_call.1} parent=11 // pred_fallthru
          _
        // Predicated region
        $region25: #{tpu_custom_call.1} parent=11 // pred_check
          %p174 = pneg %p124
        $region26: #{tpu_custom_call.1} parent=11 // pred_check_branch
          %176 = sbr.rel (%p174) target = $region28
        $region27: #{tpu_custom_call.1} parent=11 // pred_region
          _
        $region28: #{tpu_custom_call.1} parent=11 // pred_fallthru
          _
      $region12: #{tpu_custom_call.1} parent=5 // pred_fallthru
        _
      %p177 = scmp.lt.s32.totalorder %s14, 8
      // Predicated region
      $region29: #{tpu_custom_call.1} parent=5 // pred_check
        %p178 = pneg %p177
      $region30: #{tpu_custom_call.1} parent=5 // pred_check_branch
        %180 = sbr.rel (%p178) target = $region32
      $region31: #{tpu_custom_call.1} parent=5 // pred_region
        // Predicated region
        $region33: #{tpu_custom_call.1} parent=31 // pred_check
          %p181 = pneg %p34
        $region34: #{tpu_custom_call.1} parent=31 // pred_check_branch
          %183 = sbr.rel (%p181) target = $region36
        $region35: #{tpu_custom_call.1} parent=31 // pred_region
          %s184 = smul.u32 32, %s14
          %p185 = scmp.lt.s32.totalorder %s184, 255
          %s186 = scalar_select %p185, %s184, 255
          %s187 = smul.addr %s186, 4
          %s188 = scalar_lea.vmem %s0, %s187
          %s189 = smul.u32 32, %s14
        $region36: #{tpu_custom_call.1} parent=31 // pred_fallthru
          _
      $region32: #{tpu_custom_call.1} parent=5 // pred_fallthru
        _
      %p190 = scmp.le.s32.totalorder 1, %s14
      %p191 = scmp.lt.s32.totalorder %s14, 9
      %p192 = pnand %p190, %p191
      %p193 = pneg %p192
      // Predicated region
      $region37: #{tpu_custom_call.1} parent=5 // pred_check
        _
      $region38: #{tpu_custom_call.1} parent=5 // pred_check_branch
        %195 = sbr.rel (%p192) target = $region40
      $region39: #{tpu_custom_call.1} parent=5 // pred_region
        %s196 = ssub.s32 %s14, 1
        %s197 = smul.u32 32, %s19
        %p198 = scmp.lt.s32.totalorder %s197, 255
        %s199 = scalar_select %p198, %s197, 255
        %s200 = smul.addr %s199, 4
        %s201 = scalar_lea.vmem %s0, %s200
        %p202 = pneg %p40
        %p203 = pneg %p37
        %p204 = pneg %p61
        %p205 = pneg %p58
        %p206 = pneg %p82
        %p207 = pneg %p79
        %p208 = pneg %p103
        %p209 = pneg %p100
        %p210 = pneg %p124
        %p211 = pneg %p121
        %p212 = pneg %p150
        %p213 = pneg %p147
        %s214 = sand.u32 %s137, 1
        %s215 = scalar_lea.sflag [#allocation3], %s214
        %s216 = sand.u32 %s137, 1
        %s217 = smul.addr %s216, 4
        %s218 = scalar_lea.vmem [#allocation2], %s217
        %s219 = smul.u32 32, %s19
        %p220 = scmp.lt.s32.totalorder %s219, 255
        %s221 = scalar_select %p220, %s219, 255
        %s222 = smul.addr %s221, 4
        %s223 = scalar_lea.vmem %s0, %s222
        %s224 = smul.u32 32, %s19
        %v226 = vld [vmem:[%s223] sm:$0xf]
        %v227 = vld [vmem:[%s223 + $0x4] sm:$0xf]
        %v228 = vld [vmem:[%s223 + $0x8] sm:$0xf]
        %v229 = vld [vmem:[%s223 + $0xc] sm:$0xf]
        %v230 = vld [vmem:[%s223 + $0x10] sm:$0xf]
        %v231 = vld [vmem:[%s223 + $0x14] sm:$0xf]
        %v232 = vld [vmem:[%s223 + $0x18] sm:$0xf]
        %v233 = vld [vmem:[%s223 + $0x1c] sm:$0xf]
        %v234 = vld [vmem:[%s223 + $0x20] sm:$0xf]
        %v235 = vld [vmem:[%s223 + $0x24] sm:$0xf]
        %v236 = vld [vmem:[%s223 + $0x28] sm:$0xf]
        %v237 = vld [vmem:[%s223 + $0x2c] sm:$0xf]
        %v238 = vld [vmem:[%s223 + $0x30] sm:$0xf]
        %v239 = vld [vmem:[%s223 + $0x34] sm:$0xf]
        %v240 = vld [vmem:[%s223 + $0x38] sm:$0xf]
        %v241 = vld [vmem:[%s223 + $0x3c] sm:$0xf]
        %v242 = vld [vmem:[%s223 + $0x40] sm:$0xf]
        %v243 = vld [vmem:[%s223 + $0x44] sm:$0xf]
        %v244 = vld [vmem:[%s223 + $0x48] sm:$0xf]
        %v245 = vld [vmem:[%s223 + $0x4c] sm:$0xf]
        %v246 = vld [vmem:[%s223 + $0x50] sm:$0xf]
        %v247 = vld [vmem:[%s223 + $0x54] sm:$0xf]
        %v248 = vld [vmem:[%s223 + $0x58] sm:$0xf]
        %v249 = vld [vmem:[%s223 + $0x5c] sm:$0xf]
        %v250 = vld [vmem:[%s223 + $0x60] sm:$0xf]
        %v251 = vld [vmem:[%s223 + $0x64] sm:$0xf]
        %v252 = vld [vmem:[%s223 + $0x68] sm:$0xf]
        %v253 = vld [vmem:[%s223 + $0x6c] sm:$0xf]
        %v254 = vld [vmem:[%s223 + $0x70] sm:$0xf]
        %v255 = vld [vmem:[%s223 + $0x74] sm:$0xf]
        %v256 = vld [vmem:[%s223 + $0x78] sm:$0xf]
        %v257 = vld [vmem:[%s223 + $0x7c] sm:$0xf]
        %v258 = vld [vmem:[%s1] sm:$0xf]
        %v259 = vld [vmem:[%s1 + $0x4] sm:$0xf]
        %v260 = vld [vmem:[%s1 + $0x8] sm:$0xf]
        %v261 = vld [vmem:[%s1 + $0xc] sm:$0xf]
        %v262 = vld [vmem:[%s1 + $0x10] sm:$0x3]
        %v263 = vld [vmem:[%s2] sm:$0x1]
        %v265 = vlaneseq
        %v266 = vshrl.u32 %v265, 7
        %v267 = vsub.s32 0, %v266
        %v268 = vrot.slane %v263, %v267
        %v302 = vunpack.c.l.b16 %v226
        %v303 = vunpack.c.l.b16 %v227
        %v304 = vunpack.c.l.b16 %v228
        %v305 = vunpack.c.l.b16 %v229
        %v306 = vunpack.c.l.b16 %v230
        %v307 = vunpack.c.l.b16 %v231
        %v308 = vunpack.c.l.b16 %v232
        %v309 = vunpack.c.l.b16 %v233
        %v310 = vunpack.c.l.b16 %v234
        %v311 = vunpack.c.l.b16 %v235
        %v312 = vunpack.c.l.b16 %v236
        %v313 = vunpack.c.l.b16 %v237
        %v314 = vunpack.c.l.b16 %v238
        %v315 = vunpack.c.l.b16 %v239
        %v316 = vunpack.c.l.b16 %v240
        %v317 = vunpack.c.l.b16 %v241
        %v318 = vunpack.c.l.b16 %v242
        %v319 = vunpack.c.l.b16 %v243
        %v320 = vunpack.c.l.b16 %v244
        %v321 = vunpack.c.l.b16 %v245
        %v322 = vunpack.c.l.b16 %v246
        %v323 = vunpack.c.l.b16 %v247
        %v324 = vunpack.c.l.b16 %v248
        %v325 = vunpack.c.l.b16 %v249
        %v326 = vunpack.c.l.b16 %v250
        %v327 = vunpack.c.l.b16 %v251
        %v328 = vunpack.c.l.b16 %v252
        %v329 = vunpack.c.l.b16 %v253
        %v330 = vunpack.c.l.b16 %v254
        %v331 = vunpack.c.l.b16 %v255
        %v332 = vunpack.c.l.b16 %v256
        %v333 = vunpack.c.l.b16 %v257
        %v334 = vpack.c.b16 %v303, %v302
        %v335 = vpack.c.b16 %v305, %v304
        %v336 = vpack.c.b16 %v307, %v306
        %v337 = vpack.c.b16 %v309, %v308
        %v338 = vpack.c.b16 %v311, %v310
        %v339 = vpack.c.b16 %v313, %v312
        %v340 = vpack.c.b16 %v315, %v314
        %v341 = vpack.c.b16 %v317, %v316
        %v342 = vpack.c.b16 %v319, %v318
        %v343 = vpack.c.b16 %v321, %v320
        %v344 = vpack.c.b16 %v323, %v322
        %v345 = vpack.c.b16 %v325, %v324
        %v346 = vpack.c.b16 %v327, %v326
        %v347 = vpack.c.b16 %v329, %v328
        %v348 = vpack.c.b16 %v331, %v330
        %v349 = vpack.c.b16 %v333, %v332
        %v355 = vunpack.c.l.b16 %v258
        %v356 = vunpack.c.l.b16 %v259
        %v357 = vunpack.c.l.b16 %v260
        %v358 = vunpack.c.l.b16 %v261
        %v359 = vunpack.c.l.b16 %v262
        %v360 = vpack.c.b16 %v356, %v355
        %v361 = vpack.c.b16 %v358, %v357
        %v362 = vpack.c.b16 %v359, %v359
        %vm365 = vcmask 293888
        %v367 = vsel %vm365, %v334, 0
        %v370 = vsel %vm365, %v335, 0
        %v373 = vsel %vm365, %v336, 0
        %v376 = vsel %vm365, %v337, 0
        %v379 = vsel %vm365, %v338, 0
        %v382 = vsel %vm365, %v339, 0
        %v385 = vsel %vm365, %v340, 0
        %v388 = vsel %vm365, %v341, 0
        %v391 = vsel %vm365, %v342, 0
        %v394 = vsel %vm365, %v343, 0
        %v397 = vsel %vm365, %v344, 0
        %v400 = vsel %vm365, %v345, 0
        %v403 = vsel %vm365, %v346, 0
        %v406 = vsel %vm365, %v347, 0
        %v409 = vsel %vm365, %v348, 0
        %v412 = vsel %vm365, %v349, 0
        %vm414 = vcmask 1041408
        %v416 = vsel %vm414, %v362, 0
        %418 = vmatprep.subr.bf16.mxu0 0
        %419 = vmatpush1.bf16.msra.mxu0 %v360
        %420 = vmatprep.subr.bf16.mxu0 0
        %421 = vmatpush1.bf16.msra.mxu0 %v361
        %422 = vmatprep.subr.bf16.mxu0 0
        %423 = vmatpush1.bf16.msra.mxu0 %v416
        %424 = vmatprep.subr.bf16.mxu0 0
        %425 = vmatpush1.bf16.msra.mxu0 0
        %426 = vmatprep.subr.bf16.mxu0 0
        %427 = vmatpush1.bf16.msra.mxu0 0
        %428 = vmatprep.subr.bf16.mxu0 0
        %429 = vmatpush1.bf16.msra.mxu0 0
        %430 = vmatprep.subr.bf16.mxu0 0
        %431 = vmatpush1.bf16.msra.mxu0 0
        %432 = vmatprep.subr.bf16.mxu0 0
        %433 = vmatpush1.bf16.msra.mxu0 0
        %434 = vmatprep.subr.bf16.mxu0 0
        %435 = vmatpush1.bf16.msra.mxu0 0
        %436 = vmatprep.subr.bf16.mxu0 0
        %437 = vmatpush1.bf16.msra.mxu0 0
        %438 = vmatprep.subr.bf16.mxu0 0
        %439 = vmatpush1.bf16.msra.mxu0 0
        %440 = vmatprep.subr.bf16.mxu0 0
        %441 = vmatpush1.bf16.msra.mxu0 0
        %442 = vmatprep.subr.bf16.mxu0 0
        %443 = vmatpush1.bf16.msra.mxu0 0
        %444 = vmatprep.subr.bf16.mxu0 0
        %445 = vmatpush1.bf16.msra.mxu0 0
        %446 = vmatprep.subr.bf16.mxu0 0
        %447 = vmatpush1.bf16.msra.mxu0 0
        %448 = vmatprep.subr.bf16.mxu0 0
        %449 = vmatpush1.bf16.msra.mxu0 0
        %450 = vmatprep.mubr.bf16.mxu0 0
        %451 = vmatmul.mubr.bf16.gmra.mrb[0].mxu0 %v367
        %v452 = vpop.f32.mrb[0].mxu0
        %v453 = vadd.f32 %v268, %v452
        %v454 = vpop.f32.mrb[0].mxu0
        %v455 = vpop.f32.mrb[0].mxu0
        %v456 = vadd.f32 %v268, %v455
        %v457 = vpop.f32.mrb[0].mxu0
        %458 = vmatprep.mubr.bf16.mxu0 0
        %459 = vmatmul.mubr.bf16.gmra.mrb[0].mxu0 %v370
        %v460 = vpop.f32.mrb[0].mxu0
        %v461 = vadd.f32 %v268, %v460
        %v462 = vpop.f32.mrb[0].mxu0
        %v463 = vpop.f32.mrb[0].mxu0
        %v464 = vadd.f32 %v268, %v463
        %v465 = vpop.f32.mrb[0].mxu0
        %466 = vmatprep.mubr.bf16.mxu0 0
        %467 = vmatmul.mubr.bf16.gmra.mrb[0].mxu0 %v373
        %v468 = vpop.f32.mrb[0].mxu0
        %v469 = vadd.f32 %v268, %v468
        %v470 = vpop.f32.mrb[0].mxu0
        %v471 = vpop.f32.mrb[0].mxu0
        %v472 = vadd.f32 %v268, %v471
        %v473 = vpop.f32.mrb[0].mxu0
        %474 = vmatprep.mubr.bf16.mxu0 0
        %475 = vmatmul.mubr.bf16.gmra.mrb[0].mxu0 %v376
        %v476 = vpop.f32.mrb[0].mxu0
        %v477 = vadd.f32 %v268, %v476
        %v478 = vpop.f32.mrb[0].mxu0
        %v479 = vpop.f32.mrb[0].mxu0
        %v480 = vadd.f32 %v268, %v479
        %v481 = vpop.f32.mrb[0].mxu0
        %482 = vmatprep.mubr.bf16.mxu0 0
        %483 = vmatmul.mubr.bf16.gmra.mrb[0].mxu0 %v379
        %v484 = vpop.f32.mrb[0].mxu0
        %v485 = vadd.f32 %v268, %v484
        %v486 = vpop.f32.mrb[0].mxu0
        %v487 = vpop.f32.mrb[0].mxu0
        %v488 = vadd.f32 %v268, %v487
        %v489 = vpop.f32.mrb[0].mxu0
        %490 = vmatprep.mubr.bf16.mxu0 0
        %491 = vmatmul.mubr.bf16.gmra.mrb[0].mxu0 %v382
        %v492 = vpop.f32.mrb[0].mxu0
        %v493 = vadd.f32 %v268, %v492
        %v494 = vpop.f32.mrb[0].mxu0
        %v495 = vpop.f32.mrb[0].mxu0
        %v496 = vadd.f32 %v268, %v495
        %v497 = vpop.f32.mrb[0].mxu0
        %498 = vmatprep.mubr.bf16.mxu0 0
        %499 = vmatmul.mubr.bf16.gmra.mrb[0].mxu0 %v385
        %v500 = vpop.f32.mrb[0].mxu0
        %v501 = vadd.f32 %v268, %v500
        %v502 = vpop.f32.mrb[0].mxu0
        %v503 = vpop.f32.mrb[0].mxu0
        %v504 = vadd.f32 %v268, %v503
        %v505 = vpop.f32.mrb[0].mxu0
        %506 = vmatprep.mubr.bf16.mxu0 0
        %507 = vmatmul.mubr.bf16.gmra.mrb[0].mxu0 %v388
        %v508 = vpop.f32.mrb[0].mxu0
        %v509 = vadd.f32 %v268, %v508
        %v510 = vpop.f32.mrb[0].mxu0
        %v511 = vpop.f32.mrb[0].mxu0
        %v512 = vadd.f32 %v268, %v511
        %v513 = vpop.f32.mrb[0].mxu0
        %514 = vmatprep.mubr.bf16.mxu0 0
        %515 = vmatmul.mubr.bf16.gmra.mrb[0].mxu0 %v391
        %v516 = vpop.f32.mrb[0].mxu0
        %v517 = vadd.f32 %v268, %v516
        %v518 = vpop.f32.mrb[0].mxu0
        %v519 = vpop.f32.mrb[0].mxu0
        %v520 = vadd.f32 %v268, %v519
        %v521 = vpop.f32.mrb[0].mxu0
        %522 = vmatprep.mubr.bf16.mxu0 0
        %523 = vmatmul.mubr.bf16.gmra.mrb[0].mxu0 %v394
        %v524 = vpop.f32.mrb[0].mxu0
        %v525 = vadd.f32 %v268, %v524
        %v526 = vpop.f32.mrb[0].mxu0
        %v527 = vpop.f32.mrb[0].mxu0
        %v528 = vadd.f32 %v268, %v527
        %v529 = vpop.f32.mrb[0].mxu0
        %530 = vmatprep.mubr.bf16.mxu0 0
        %531 = vmatmul.mubr.bf16.gmra.mrb[0].mxu0 %v397
        %v532 = vpop.f32.mrb[0].mxu0
        %v533 = vadd.f32 %v268, %v532
        %v534 = vpop.f32.mrb[0].mxu0
        %v535 = vpop.f32.mrb[0].mxu0
        %v536 = vadd.f32 %v268, %v535
        %v537 = vpop.f32.mrb[0].mxu0
        %538 = vmatprep.mubr.bf16.mxu0 0
        %539 = vmatmul.mubr.bf16.gmra.mrb[0].mxu0 %v400
        %v540 = vpop.f32.mrb[0].mxu0
        %v541 = vadd.f32 %v268, %v540
        %v542 = vpop.f32.mrb[0].mxu0
        %v543 = vpop.f32.mrb[0].mxu0
        %v544 = vadd.f32 %v268, %v543
        %v545 = vpop.f32.mrb[0].mxu0
        %546 = vmatprep.mubr.bf16.mxu0 0
        %547 = vmatmul.mubr.bf16.gmra.mrb[0].mxu0 %v403
        %v548 = vpop.f32.mrb[0].mxu0
        %v549 = vadd.f32 %v268, %v548
        %v550 = vpop.f32.mrb[0].mxu0
        %v551 = vpop.f32.mrb[0].mxu0
        %v552 = vadd.f32 %v268, %v551
        %v553 = vpop.f32.mrb[0].mxu0
        %554 = vmatprep.mubr.bf16.mxu0 0
        %555 = vmatmul.mubr.bf16.gmra.mrb[0].mxu0 %v406
        %v556 = vpop.f32.mrb[0].mxu0
        %v557 = vadd.f32 %v268, %v556
        %v558 = vpop.f32.mrb[0].mxu0
        %v559 = vpop.f32.mrb[0].mxu0
        %v560 = vadd.f32 %v268, %v559
        %v561 = vpop.f32.mrb[0].mxu0
        %562 = vmatprep.mubr.bf16.mxu0 0
        %563 = vmatmul.mubr.bf16.gmra.mrb[0].mxu0 %v409
        %v564 = vpop.f32.mrb[0].mxu0
        %v565 = vadd.f32 %v268, %v564
        %v566 = vpop.f32.mrb[0].mxu0
        %v567 = vpop.f32.mrb[0].mxu0
        %v568 = vadd.f32 %v268, %v567
        %v569 = vpop.f32.mrb[0].mxu0
        %570 = vmatprep.mubr.bf16.mxu0 0
        %571 = vmatmul.mubr.bf16.gmra.mrb[0].mxu0 %v412
        %v572 = vpop.f32.mrb[0].mxu0
        %v573 = vadd.f32 %v268, %v572
        %v574 = vpop.f32.mrb[0].mxu0
        %v575 = vpop.f32.mrb[0].mxu0
        %v576 = vadd.f32 %v268, %v575
        %v577 = vpop.f32.mrb[0].mxu0
        %578 = vdwg.mxu0
        %v579 = vmax.f32 %v453, 0.0
        %v580 = vmax.f32 %v456, 0.0
        %v581 = vmax.f32 %v461, 0.0
        %v582 = vmax.f32 %v464, 0.0
        %v583 = vmax.f32 %v469, 0.0
        %v584 = vmax.f32 %v472, 0.0
        %v585 = vmax.f32 %v477, 0.0
        %v586 = vmax.f32 %v480, 0.0
        %v587 = vmax.f32 %v485, 0.0
        %v588 = vmax.f32 %v488, 0.0
        %v589 = vmax.f32 %v493, 0.0
        %v590 = vmax.f32 %v496, 0.0
        %v591 = vmax.f32 %v501, 0.0
        %v592 = vmax.f32 %v504, 0.0
        %v593 = vmax.f32 %v509, 0.0
        %v594 = vmax.f32 %v512, 0.0
        %v595 = vmax.f32 %v517, 0.0
        %v596 = vmax.f32 %v520, 0.0
        %v597 = vmax.f32 %v525, 0.0
        %v598 = vmax.f32 %v528, 0.0
        %v599 = vmax.f32 %v533, 0.0
        %v600 = vmax.f32 %v536, 0.0
        %v601 = vmax.f32 %v541, 0.0
        %v602 = vmax.f32 %v544, 0.0
        %v603 = vmax.f32 %v549, 0.0
        %v604 = vmax.f32 %v552, 0.0
        %v605 = vmax.f32 %v557, 0.0
        %v606 = vmax.f32 %v560, 0.0
        %v607 = vmax.f32 %v565, 0.0
        %v608 = vmax.f32 %v568, 0.0
        %v609 = vmax.f32 %v573, 0.0
        %v610 = vmax.f32 %v576, 0.0
        %v611 = vadd.f32 %v579, %v580
        %v612 = vadd.f32 %v611, %v581
        %v613 = vadd.f32 %v612, %v582
        %v614 = vadd.f32 %v613, %v583
        %v615 = vadd.f32 %v614, %v584
        %v616 = vadd.f32 %v615, %v585
        %v617 = vadd.f32 %v616, %v586
        %v618 = vadd.f32 %v617, %v587
        %v619 = vadd.f32 %v618, %v588
        %v620 = vadd.f32 %v619, %v589
        %v621 = vadd.f32 %v620, %v590
        %v622 = vadd.f32 %v621, %v591
        %v623 = vadd.f32 %v622, %v592
        %v624 = vadd.f32 %v623, %v593
        %v625 = vadd.f32 %v624, %v594
        %v626 = vadd.f32 %v625, %v595
        %v627 = vadd.f32 %v626, %v596
        %v628 = vadd.f32 %v627, %v597
        %v629 = vadd.f32 %v628, %v598
        %v630 = vadd.f32 %v629, %v599
        %v631 = vadd.f32 %v630, %v600
        %v632 = vadd.f32 %v631, %v601
        %v633 = vadd.f32 %v632, %v602
        %v634 = vadd.f32 %v633, %v603
        %v635 = vadd.f32 %v634, %v604
        %v636 = vadd.f32 %v635, %v605
        %v637 = vadd.f32 %v636, %v606
        %v638 = vadd.f32 %v637, %v607
        %v639 = vadd.f32 %v638, %v608
        %v640 = vadd.f32 %v639, %v609
        %v641 = vadd.f32 %v640, %v610
        %v642 = vrot.slane %v641, 4
        %v643 = vadd.f32 %v641, %v642
        %v644 = vrot.slane %v643, 2
        %v645 = vadd.f32 %v643, %v644
        %v646 = vrot.slane %v645, 1
        %v647 = vadd.f32 %v645, %v646
        %v648 = vmul.f32 %v647, 0.00390625
        %v649 = vpack.c.bf16 %v648, %v648
        %v650 = vld [vmem:[%s3] sm:$0xff]
        %v651 = vld [vmem:[%s3 + $0x8] sm:$0xff]
        %v652 = vld [vmem:[%s3 + $0x10] sm:$0xff]
        %v653 = vld [vmem:[%s3 + $0x18] sm:$0xff]
        %v654 = vld [vmem:[%s3 + $0x20] sm:$0xff]
        %v655 = vld [vmem:[%s3 + $0x28] sm:$0xff]
        %v656 = vld [vmem:[%s3 + $0x30] sm:$0xff]
        %v657 = vld [vmem:[%s3 + $0x38] sm:$0xff]
        %v658 = vld [vmem:[%s3 + $0x40] sm:$0xff]
        %v659 = vld [vmem:[%s3 + $0x48] sm:$0xff]
        %v660 = vld [vmem:[%s3 + $0x50] sm:$0xff]
        %v661 = vld [vmem:[%s3 + $0x58] sm:$0xff]
        %v662 = vld [vmem:[%s3 + $0x60] sm:$0xff]
        %v663 = vld [vmem:[%s3 + $0x68] sm:$0xff]
        %v664 = vld [vmem:[%s3 + $0x70] sm:$0xff]
        %v665 = vld [vmem:[%s3 + $0x78] sm:$0xff]
        %v666 = vld [vmem:[%s3 + $0x80] sm:$0xff]
        %v667 = vld [vmem:[%s3 + $0x88] sm:$0xff]
        %v668 = vld [vmem:[%s3 + $0x90] sm:$0xff]
        %v669 = vld [vmem:[%s3 + $0x98] sm:$0xff]
        %v670 = vld [vmem:[%s3 + $0xa0] sm:$0xff]
        %v671 = vld [vmem:[%s3 + $0xa8] sm:$0xff]
        %v672 = vld [vmem:[%s3 + $0xb0] sm:$0xff]
        %v673 = vld [vmem:[%s3 + $0xb8] sm:$0xff]
        %v674 = vld [vmem:[%s3 + $0xc0] sm:$0xff]
        %v675 = vld [vmem:[%s3 + $0xc8] sm:$0xff]
        %v676 = vld [vmem:[%s3 + $0xd0] sm:$0xff]
        %v677 = vld [vmem:[%s3 + $0xd8] sm:$0xff]
        %v678 = vld [vmem:[%s3 + $0xe0] sm:$0xff]
        %v679 = vld [vmem:[%s3 + $0xe8] sm:$0xff]
        %v680 = vld [vmem:[%s3 + $0xf0] sm:$0xff]
        %v681 = vld [vmem:[%s3 + $0xf8] sm:$0xff]
        %v682 = vld [vmem:[%s4] sm:$0xf]
        %v715 = vunpack.c.l.b16 %v650
        %v716 = vunpack.c.h.b16 %v650
        %v717 = vunpack.c.l.b16 %v651
        %v718 = vunpack.c.h.b16 %v651
        %v719 = vunpack.c.l.b16 %v652
        %v720 = vunpack.c.h.b16 %v652
        %v721 = vunpack.c.l.b16 %v653
        %v722 = vunpack.c.h.b16 %v653
        %v723 = vunpack.c.l.b16 %v654
        %v724 = vunpack.c.h.b16 %v654
        %v725 = vunpack.c.l.b16 %v655
        %v726 = vunpack.c.h.b16 %v655
        %v727 = vunpack.c.l.b16 %v656
        %v728 = vunpack.c.h.b16 %v656
        %v729 = vunpack.c.l.b16 %v657
        %v730 = vunpack.c.h.b16 %v657
        %v731 = vunpack.c.l.b16 %v658
        %v732 = vunpack.c.h.b16 %v658
        %v733 = vunpack.c.l.b16 %v659
        %v734 = vunpack.c.h.b16 %v659
        %v735 = vunpack.c.l.b16 %v660
        %v736 = vunpack.c.h.b16 %v660
        %v737 = vunpack.c.l.b16 %v661
        %v738 = vunpack.c.h.b16 %v661
        %v739 = vunpack.c.l.b16 %v662
        %v740 = vunpack.c.h.b16 %v662
        %v741 = vunpack.c.l.b16 %v663
        %v742 = vunpack.c.h.b16 %v663
        %v743 = vunpack.c.l.b16 %v664
        %v744 = vunpack.c.h.b16 %v664
        %v745 = vunpack.c.l.b16 %v665
        %v746 = vunpack.c.h.b16 %v665
        %v747 = vunpack.c.l.b16 %v666
        %v748 = vunpack.c.h.b16 %v666
        %v749 = vunpack.c.l.b16 %v667
        %v750 = vunpack.c.h.b16 %v667
        %v751 = vunpack.c.l.b16 %v668
        %v752 = vunpack.c.h.b16 %v668
        %v753 = vunpack.c.l.b16 %v669
        %v754 = vunpack.c.h.b16 %v669
        %v755 = vunpack.c.l.b16 %v670
        %v756 = vunpack.c.h.b16 %v670
        %v757 = vunpack.c.l.b16 %v671
        %v758 = vunpack.c.h.b16 %v671
        %v759 = vunpack.c.l.b16 %v672
        %v760 = vunpack.c.h.b16 %v672
        %v761 = vunpack.c.l.b16 %v673
        %v762 = vunpack.c.h.b16 %v673
        %v763 = vunpack.c.l.b16 %v674
        %v764 = vunpack.c.h.b16 %v674
        %v765 = vunpack.c.l.b16 %v675
        %v766 = vunpack.c.h.b16 %v675
        %v767 = vunpack.c.l.b16 %v676
        %v768 = vunpack.c.h.b16 %v676
        %v769 = vunpack.c.l.b16 %v677
        %v770 = vunpack.c.h.b16 %v677
        %v771 = vunpack.c.l.b16 %v678
        %v772 = vunpack.c.h.b16 %v678
        %v773 = vunpack.c.l.b16 %v679
        %v774 = vunpack.c.h.b16 %v679
        %v775 = vunpack.c.l.b16 %v680
        %v776 = vunpack.c.h.b16 %v680
        %v777 = vunpack.c.l.b16 %v681
        %v778 = vunpack.c.h.b16 %v681
        %v779 = vpack.c.b16 %v719, %v715
        %v780 = vpack.c.b16 %v720, %v716
        %v781 = vpack.c.b16 %v721, %v717
        %v782 = vpack.c.b16 %v722, %v718
        %v783 = vpack.c.b16 %v727, %v723
        %v784 = vpack.c.b16 %v728, %v724
        %v785 = vpack.c.b16 %v729, %v725
        %v786 = vpack.c.b16 %v730, %v726
        %v787 = vpack.c.b16 %v735, %v731
        %v788 = vpack.c.b16 %v736, %v732
        %v789 = vpack.c.b16 %v737, %v733
        %v790 = vpack.c.b16 %v738, %v734
        %v791 = vpack.c.b16 %v743, %v739
        %v792 = vpack.c.b16 %v744, %v740
        %v793 = vpack.c.b16 %v745, %v741
        %v794 = vpack.c.b16 %v746, %v742
        %v795 = vpack.c.b16 %v751, %v747
        %v796 = vpack.c.b16 %v752, %v748
        %v797 = vpack.c.b16 %v753, %v749
        %v798 = vpack.c.b16 %v754, %v750
        %v799 = vpack.c.b16 %v759, %v755
        %v800 = vpack.c.b16 %v760, %v756
        %v801 = vpack.c.b16 %v761, %v757
        %v802 = vpack.c.b16 %v762, %v758
        %v803 = vpack.c.b16 %v767, %v763
        %v804 = vpack.c.b16 %v768, %v764
        %v805 = vpack.c.b16 %v769, %v765
        %v806 = vpack.c.b16 %v770, %v766
        %v807 = vpack.c.b16 %v775, %v771
        %v808 = vpack.c.b16 %v776, %v772
        %v809 = vpack.c.b16 %v777, %v773
        %v810 = vpack.c.b16 %v778, %v774
        %v844 = vlaneseq
        %v845 = vshrl.u32 %v844, 7
        %v846 = vsub.s32 0, %v845
        %v847 = vrot.slane %v682, %v846
        %v848 = vlaneseq
        %v849 = vshrl.u32 %v848, 7
        %v850 = vsub.s32 1, %v849
        %v851 = vrot.slane %v682, %v850
        %v852 = vlaneseq
        %v853 = vshrl.u32 %v852, 7
        %v854 = vsub.s32 2, %v853
        %v855 = vrot.slane %v682, %v854
        %v856 = vlaneseq
        %v857 = vshrl.u32 %v856, 7
        %v858 = vsub.s32 3, %v857
        %v859 = vrot.slane %v682, %v858
        %864 = vmatprep.subr.bf16.mxu0 %v780
        %865 = vmatpush1.bf16.msra.mxu0 %v779
        %866 = vmatprep.subr.bf16.mxu0 %v784
        %867 = vmatpush1.bf16.msra.mxu0 %v783
        %868 = vmatprep.subr.bf16.mxu0 %v788
        %869 = vmatpush1.bf16.msra.mxu0 %v787
        %870 = vmatprep.subr.bf16.mxu0 %v792
        %871 = vmatpush1.bf16.msra.mxu0 %v791
        %872 = vmatprep.subr.bf16.mxu0 %v796
        %873 = vmatpush1.bf16.msra.mxu0 %v795
        %874 = vmatprep.subr.bf16.mxu0 %v800
        %875 = vmatpush1.bf16.msra.mxu0 %v799
        %876 = vmatprep.subr.bf16.mxu0 %v804
        %877 = vmatpush1.bf16.msra.mxu0 %v803
        %878 = vmatprep.subr.bf16.mxu0 %v808
        %879 = vmatpush1.bf16.msra.mxu0 %v807
        %880 = vmatprep.subr.bf16.mxu0 0
        %881 = vmatpush1.bf16.msra.mxu0 0
        %882 = vmatprep.subr.bf16.mxu0 0
        %883 = vmatpush1.bf16.msra.mxu0 0
        %884 = vmatprep.subr.bf16.mxu0 0
        %885 = vmatpush1.bf16.msra.mxu0 0
        %886 = vmatprep.subr.bf16.mxu0 0
        %887 = vmatpush1.bf16.msra.mxu0 0
        %888 = vmatprep.subr.bf16.mxu0 0
        %889 = vmatpush1.bf16.msra.mxu0 0
        %890 = vmatprep.subr.bf16.mxu0 0
        %891 = vmatpush1.bf16.msra.mxu0 0
        %892 = vmatprep.subr.bf16.mxu0 0
        %893 = vmatpush1.bf16.msra.mxu0 0
        %894 = vmatprep.subr.bf16.mxu0 0
        %895 = vmatpush1.bf16.msra.mxu0 0
        %896 = vmatprep.mubr.bf16.mxu0 0
        %897 = vmatmul.mubr.bf16.gmra.mrb[0].mxu0 %v649
        %v898 = vpop.f32.mrb[0].mxu0
        %v899 = vadd.f32 %v847, %v898
        %v900 = vpop.f32.mrb[0].mxu0
        %v901 = vadd.f32 %v851, %v900
        %v902 = vpop.f32.mrb[0].mxu0
        %v903 = vpop.f32.mrb[0].mxu0
        %904 = vdwg.mxu0
        %905 = vmatprep.subr.bf16.mxu0 %v782
        %906 = vmatpush1.bf16.msra.mxu0 %v781
        %907 = vmatprep.subr.bf16.mxu0 %v786
        %908 = vmatpush1.bf16.msra.mxu0 %v785
        %909 = vmatprep.subr.bf16.mxu0 %v790
        %910 = vmatpush1.bf16.msra.mxu0 %v789
        %911 = vmatprep.subr.bf16.mxu0 %v794
        %912 = vmatpush1.bf16.msra.mxu0 %v793
        %913 = vmatprep.subr.bf16.mxu0 %v798
        %914 = vmatpush1.bf16.msra.mxu0 %v797
        %915 = vmatprep.subr.bf16.mxu0 %v802
        %916 = vmatpush1.bf16.msra.mxu0 %v801
        %917 = vmatprep.subr.bf16.mxu0 %v806
        %918 = vmatpush1.bf16.msra.mxu0 %v805
        %919 = vmatprep.subr.bf16.mxu0 %v810
        %920 = vmatpush1.bf16.msra.mxu0 %v809
        %921 = vmatprep.subr.bf16.mxu0 0
        %922 = vmatpush1.bf16.msra.mxu0 0
        %923 = vmatprep.subr.bf16.mxu0 0
        %924 = vmatpush1.bf16.msra.mxu0 0
        %925 = vmatprep.subr.bf16.mxu0 0
        %926 = vmatpush1.bf16.msra.mxu0 0
        %927 = vmatprep.subr.bf16.mxu0 0
        %928 = vmatpush1.bf16.msra.mxu0 0
        %929 = vmatprep.subr.bf16.mxu0 0
        %930 = vmatpush1.bf16.msra.mxu0 0
        %931 = vmatprep.subr.bf16.mxu0 0
        %932 = vmatpush1.bf16.msra.mxu0 0
        %933 = vmatprep.subr.bf16.mxu0 0
        %934 = vmatpush1.bf16.msra.mxu0 0
        %935 = vmatprep.subr.bf16.mxu0 0
        %936 = vmatpush1.bf16.msra.mxu0 0
        %937 = vmatprep.mubr.bf16.mxu0 0
        %938 = vmatmul.mubr.bf16.gmra.mrb[0].mxu0 %v649
        %v939 = vpop.f32.mrb[0].mxu0
        %v940 = vadd.f32 %v855, %v939
        %v941 = vpop.f32.mrb[0].mxu0
        %v942 = vadd.f32 %v859, %v941
        %v943 = vpop.f32.mrb[0].mxu0
        %v944 = vpop.f32.mrb[0].mxu0
        %945 = vdwg.mxu0
        %v950 = vcombine.low %v899, %v901
        %v951 = vcombine.low %v940, %v942
        %v953 = vunpack.c.l.s4 1966171168
        %v954 = vunpack.c.0.s8 %v953
        %v955 = vlaneseq
        %v956 = vshrl.u32 %v955, 7
        %v957 = vsub.s32 %v954, %v956
        %v958 = vrot.slane %v950, %v957
        %v960 = vunpack.c.l.s4 1966171168
        %v961 = vunpack.c.0.s8 %v960
        %v962 = vlaneseq
        %v963 = vshrl.u32 %v962, 7
        %v964 = vsub.s32 %v961, %v963
        %v965 = vrot.slane %v951, %v964
        %v966 = vcombine.low %v958, %v965
        %v968 = vunpack.c.l.s4 1966171168
        %v969 = vunpack.c.0.s8 %v968
        %v970 = vlaneseq
        %v971 = vshrl.u32 %v970, 7
        %v972 = vsub.s32 %v969, %v971
        %v973 = vrot.slane %v966, %v972
        %v975 = vlaneseq
        %vm976 = vcmp.ge.s32.totalorder %v975, 0
        %vm977 = vcmp.lt.s32.totalorder %v975, 512
        %vm978 = vmand %vm976, %vm977
        %979 = vst.msk [vmem:[%s218] sm:$0xf] %vm978, %v973
        %s980 = sand.u32 %s137, 1
        %s981 = scalar_lea.sflag [#allocation3], %s980
        %s982 = sand.u32 %s137, 1
        %s983 = smul.addr %s982, 4
        %s984 = scalar_lea.vmem [#allocation2], %s983
        // Predicated region
        $region41: #{tpu_custom_call.1} parent=39 // pred_check
          %p985 = pneg %p147
        $region42: #{tpu_custom_call.1} parent=39 // pred_check_branch
          %987 = sbr.rel (%p985) target = $region44
        $region43: #{tpu_custom_call.1} parent=39 // pred_region
          %s989 = ssub.s32 64, 64
          %990 = vsyncadd %s981, %s989
          %s991 = smul.addr %s19, 4
          %s992 = smul.addr %s991, 16
          %s993 = scalar_lea.hbm %s5, %s992
          %s995 = sshll.u32 %s984, 4
          %s996 = int_to_ptr.vmem [resolvable:$true] %s995
          %998 = dma.vmem_to_hbm [thread:$0]  %s996, 64, %s993, %s981
        $region44: #{tpu_custom_call.1} parent=39 // pred_fallthru
          _
      $region40: #{tpu_custom_call.1} parent=5 // pred_fallthru
        _
      %p999 = scmp.le.s32.totalorder 2, %s14
      // Predicated region
      $region45: #{tpu_custom_call.1} parent=5 // pred_check
        %p1000 = pneg %p999
      $region46: #{tpu_custom_call.1} parent=5 // pred_check_branch
        %1002 = sbr.rel (%p1000) target = $region48
      $region47: #{tpu_custom_call.1} parent=5 // pred_region
        %s1003 = ssub.s32 %s14, 2
        // Predicated region
        $region49: #{tpu_custom_call.1} parent=47 // pred_check
          %p1004 = pneg %p153
        $region50: #{tpu_custom_call.1} parent=47 // pred_check_branch
          %1006 = sbr.rel (%p1004) target = $region52
        $region51: #{tpu_custom_call.1} parent=47 // pred_region
          %s1007 = sand.u32 %s138, 1
          %s1008 = scalar_lea.sflag [#allocation3], %s1007
          %s1009 = sand.u32 %s138, 1
          %s1010 = smul.addr %s1009, 4
          %s1011 = scalar_lea.vmem [#allocation2], %s1010
          %1012 = dma.done %s1008, 64
        $region52: #{tpu_custom_call.1} parent=47 // pred_fallthru
          _
      $region48: #{tpu_custom_call.1} parent=5 // pred_fallthru
        _
    $region6: #{tpu_custom_call.1} parent=1 // loop_footer
      %s18 = sadd.s32 1, %s14
    $region7: #{tpu_custom_call.1} parent=1 // loop_footer_branch
      %13 = sbr.rel target = $region3
    $region8: #{tpu_custom_call.1} parent=1 // loop_exit
      _
    %1013 = vsyncpa [#allocation3], 1
    %s1014 = scalar_lea.sflag [#allocation3], 1
    %1015 = vsyncpa %s1014, 1

</llo_original>
